<compile_context>
chip_gen: v7x
topology: tpu7x:2x2x1
jax: 0.10.0
libtpu: 0.0.40
codegen_flags: <defaults>
</compile_context>

<pallas_src>
import jax
import jax.numpy as jnp
from jax.experimental import pallas as pl
from jax.experimental.pallas import tpu as pltpu


def _round_up(n, m):
    return ((n + m - 1) // m) * m


def _pick_tile_b(b_padded, target):
    """Largest multiple-of-8 divisor of b_padded that is <= target.

    Keeps every tile full (no wasted padded rows in a ragged last tile) and,
    for large batches, caps the tile at b_padded//2 so the "parallel" grid
    axis has >= 2 steps and can shard across both TensorCores on v7x.
    """
    if b_padded >= 512:
        target = min(target, b_padded // 2)
    target = max(8, min(target, b_padded))
    n8 = b_padded // 8
    best = 1
    for d in range(1, n8 + 1):
        if n8 % d == 0 and 8 * d <= target:
            best = d
    return 8 * best


def decoder_kernel(x_ref, w1_ref, b1_ref, w2_ref, b2_ref, o_ref):
    # Cast x to the matmul dtype on the VPU (free filler under the MXU).
    x = x_ref[...].astype(w1_ref.dtype)
    # fc1: bf16 MXU feed, f32 accumulation.
    h = jnp.dot(x, w1_ref[...], preferred_element_type=jnp.float32)
    # bias + ReLU in f32 (VPU), then keep only a single bf16 copy of the
    # hidden activation (halves intermediate VMEM/vreg footprint).
    h = jnp.maximum(h + b1_ref[...], 0.0).astype(w2_ref.dtype)
    # TODO(synk): training-mode dropout mask would be applied to `h` here.
    # fc2: bf16 MXU feed, f32 accumulation.
    y = jnp.dot(h, w2_ref[...], preferred_element_type=jnp.float32)
    # bias + tanh in f32 (VPU/EUP), store at output dtype.
    o_ref[...] = jnp.tanh(y + b2_ref[...]).astype(o_ref.dtype)


def prepare_decoder_params(w1, b1, w2, b2, *, mm_dtype=jnp.bfloat16):
    """Pad/cast the weights ONCE (hoisted out of the per-call path).

    Hidden dim is zero-padded to a multiple of 128: the padded ReLU columns
    are exactly 0 (zero bias pad) and the matching padded rows of w2 are 0,
    so the padding is mathematically identity.
    """
    infeat, hid = w1.shape
    outfeat = w2.shape[1]
    hid_p = _round_up(hid, 128)

    w1_p = jnp.zeros((infeat, hid_p), mm_dtype).at[:, :hid].set(
        w1.astype(mm_dtype))
    b1_p = jnp.zeros((1, hid_p), jnp.float32).at[:, :hid].set(
        b1.reshape(1, -1).astype(jnp.float32))
    w2_p = jnp.zeros((hid_p, outfeat), mm_dtype).at[:hid, :].set(
        w2.astype(mm_dtype))
    b2_p = b2.reshape(1, outfeat).astype(jnp.float32)
    return w1_p, b1_p, w2_p, b2_p


def decoder_forward(x, prepared_params, *, tile_b_target=512):
    """Run the decoder on `x` using params from prepare_decoder_params."""
    w1_p, b1_p, w2_p, b2_p = prepared_params
    B, infeat = x.shape
    assert w1_p.shape[0] == infeat
    hid_p = w1_p.shape[1]
    outfeat = w2_p.shape[1]
    out_dtype = x.dtype

    # Batch padding bounded to <= 7 rows; tile divides the padded batch.
    B_p = _round_up(B, 8)
    tile_b = _pick_tile_b(B_p, tile_b_target)
    x_p = x if B_p == B else jnp.pad(x, ((0, B_p - B), (0, 0)))

    grid = (B_p // tile_b,)
    vmem = pltpu.MemorySpace.VMEM

    x_bytes = jnp.dtype(x.dtype).itemsize
    mm_bytes = jnp.dtype(w1_p.dtype).itemsize
    out_bytes = jnp.dtype(out_dtype).itemsize

    # VMEM budget: double-buffered x/out tiles + (conservatively double-
    # buffered) resident weights + f32/bf16 hidden intermediate.
    vmem_need = (2 * tile_b * infeat * x_bytes
                 + 2 * tile_b * outfeat * out_bytes
                 + 2 * ((infeat + outfeat) * hid_p * mm_bytes
                        + (hid_p + outfeat) * 4)
                 + tile_b * hid_p * (4 + mm_bytes))
    vmem_limit = int(min(64 << 20, max(16 << 20, 1.5 * vmem_need + (2 << 20))))

    flops = 2 * B_p * (infeat * hid_p + hid_p * outfeat)
    bytes_accessed = (B_p * infeat * x_bytes
                      + (infeat + outfeat) * hid_p * mm_bytes
                      + (hid_p + outfeat) * 4
                      + B_p * outfeat * out_bytes)

    def run(single_buffer_weights):
        def const_spec(shape):
            kwargs = {"memory_space": vmem}
            if single_buffer_weights and hasattr(pl, "Buffered"):
                # Constant block index -> never re-fetched; single buffer
                # halves the resident-weight VMEM footprint.
                kwargs["pipeline_mode"] = pl.Buffered(1)
            return pl.BlockSpec(shape, lambda i: (0, 0), **kwargs)

        return pl.pallas_call(
            decoder_kernel,
            out_shape=jax.ShapeDtypeStruct((B_p, outfeat), out_dtype),
            grid=grid,
            in_specs=[
                pl.BlockSpec((tile_b, infeat), lambda i: (i, 0),
                             memory_space=vmem),
                const_spec((infeat, hid_p)),
                const_spec((1, hid_p)),
                const_spec((hid_p, outfeat)),
                const_spec((1, outfeat)),
            ],
            out_specs=pl.BlockSpec((tile_b, outfeat), lambda i: (i, 0),
                                   memory_space=vmem),
            compiler_params=pltpu.CompilerParams(
                dimension_semantics=("parallel",),
                vmem_limit_bytes=vmem_limit),
            cost_estimate=pl.CostEstimate(
                flops=int(flops),
                transcendentals=int(B_p * outfeat),
                bytes_accessed=int(bytes_accessed)),
        )(x_p, w1_p, b1_p, w2_p, b2_p)

    try:
        out = run(single_buffer_weights=True)
    except Exception:
        # Fallback for jax versions without single-buffer pipeline_mode.
        out = run(single_buffer_weights=False)

    return out if B_p == B else out[:B]


def init_decoder_params(key, infeat, hidfeat, outfeat, dtype=jnp.float32):
    # Deterministic synthetic init (uniform, similar scale to PyTorch default).
    k1, k2, k3, k4 = jax.random.split(key, 4)
    bound1 = 1.0 / (infeat ** 0.5)
    bound2 = 1.0 / (hidfeat ** 0.5)
    w1 = jax.random.uniform(k1, (infeat, hidfeat), dtype, -bound1, bound1)
    b1 = jax.random.uniform(k2, (1, hidfeat), dtype, -bound1, bound1)
    w2 = jax.random.uniform(k3, (hidfeat, outfeat), dtype, -bound2, bound2)
    b2 = jax.random.uniform(k4, (1, outfeat), dtype, -bound2, bound2)
    return w1, b1, w2, b2


if __name__ == "__main__":
    key = jax.random.PRNGKey(0)
    k_x, k_p = jax.random.split(key)

    batch, infeat, hidfeat, outfeat = 8, 32, 64, 16
    x = jax.random.normal(k_x, (batch, infeat), jnp.float32)
    w1, b1, w2, b2 = init_decoder_params(k_p, infeat, hidfeat, outfeat)

    # Pad / cast weights once (hoisted out of the per-call path).
    prepared = prepare_decoder_params(w1, b1, w2, b2)

    out = decoder_forward(x, prepared)
    out = jax.block_until_ready(out)

    # Reference in plain f32 JAX (eval-mode dropout = identity).
    ref = jnp.tanh(jnp.maximum(x @ w1 + b1, 0.0) @ w2 + b2)
    assert out.shape == (batch, outfeat), out.shape
    # bf16 MXU feeds with f32 accumulation -> loose tolerance vs f32 reference.
    assert jnp.allclose(out, ref, atol=2e-2, rtol=2e-2), \
        float(jnp.max(jnp.abs(out - ref)))

    print("KERNEL_OK")
</pallas_src>

<mosaic_0001>
module attributes {stable_mosaic.version = 11 : i64} {
  func.func @decoder_kernel(%arg0: i32, %arg1: memref<8x32xf32, #tpu.memory_space<vmem>>, %arg2: memref<32x128xbf16, #tpu.memory_space<vmem>>, %arg3: memref<1x128xf32, #tpu.memory_space<vmem>>, %arg4: memref<128x16xbf16, #tpu.memory_space<vmem>>, %arg5: memref<1x16xf32, #tpu.memory_space<vmem>>, %arg6: memref<8x16xf32, #tpu.memory_space<vmem>>) attributes {dimension_semantics = [#tpu.dimension_semantics<parallel>], iteration_bounds = array<i64: 1>, scalar_prefetch = 0 : i64, scratch_operands = 0 : i64, tpu.core_type = #tpu.core_type<tc>, window_params = [{transform_indices = @transform_0, window_bounds = array<i64: 8, 32>}, {pipeline_mode = #tpu.pipeline_mode<synchronous>, transform_indices = @transform_1, window_bounds = array<i64: 32, 128>}, {pipeline_mode = #tpu.pipeline_mode<synchronous>, transform_indices = @transform_2, window_bounds = array<i64: 1, 128>}, {pipeline_mode = #tpu.pipeline_mode<synchronous>, transform_indices = @transform_3, window_bounds = array<i64: 128, 16>}, {pipeline_mode = #tpu.pipeline_mode<synchronous>, transform_indices = @transform_4, window_bounds = array<i64: 1, 16>}, {transform_indices = @transform_5, window_bounds = array<i64: 8, 16>}]} {
    %c0 = arith.constant 0 : index
    %c0_0 = arith.constant 0 : index
    %0 = vector.load %arg1[%c0, %c0_0] : memref<8x32xf32, #tpu.memory_space<vmem>>, vector<8x32xf32>
    %1 = arith.truncf %0 : vector<8x32xf32> to vector<8x32xbf16>
    %c0_1 = arith.constant 0 : index
    %c0_2 = arith.constant 0 : index
    %2 = vector.load %arg2[%c0_1, %c0_2] : memref<32x128xbf16, #tpu.memory_space<vmem>>, vector<32x128xbf16>
    %cst = arith.constant dense<0.000000e+00> : vector<8x128xf32>
    %3 = tpu.matmul %1, %2, %cst {dimension_numbers = #tpu.dot_dimension_numbers<[1], [0], [0], [1], [0, 0, 1, 1], [], []>} : vector<8x32xbf16>, vector<32x128xbf16>, vector<8x128xf32> -> vector<8x128xf32>
    %c0_3 = arith.constant 0 : index
    %c0_4 = arith.constant 0 : index
    %4 = vector.load %arg3[%c0_3, %c0_4] : memref<1x128xf32, #tpu.memory_space<vmem>>, vector<1x128xf32>
    %5 = vector.broadcast %4 : vector<1x128xf32> to vector<8x128xf32>
    %6 = arith.addf %3, %5 : vector<8x128xf32>
    %cst_5 = arith.constant 0.000000e+00 : f32
    %7 = vector.broadcast %cst_5 : f32 to vector<8x128xf32>
    %8 = arith.maximumf %6, %7 : vector<8x128xf32>
    %9 = arith.truncf %8 : vector<8x128xf32> to vector<8x128xbf16>
    %c0_6 = arith.constant 0 : index
    %c0_7 = arith.constant 0 : index
    %10 = vector.load %arg4[%c0_6, %c0_7] : memref<128x16xbf16, #tpu.memory_space<vmem>>, vector<128x16xbf16>
    %cst_8 = arith.constant dense<0.000000e+00> : vector<8x16xf32>
    %11 = tpu.matmul %9, %10, %cst_8 {dimension_numbers = #tpu.dot_dimension_numbers<[1], [0], [0], [1], [0, 0, 1, 1], [], []>} : vector<8x128xbf16>, vector<128x16xbf16>, vector<8x16xf32> -> vector<8x16xf32>
    %c0_9 = arith.constant 0 : index
    %c0_10 = arith.constant 0 : index
    %12 = vector.load %arg5[%c0_9, %c0_10] : memref<1x16xf32, #tpu.memory_space<vmem>>, vector<1x16xf32>
    %13 = vector.broadcast %12 : vector<1x16xf32> to vector<8x16xf32>
    %14 = arith.addf %11, %13 : vector<8x16xf32>
    %15 = math.tanh %14 : vector<8x16xf32>
    %c0_11 = arith.constant 0 : index
    %c0_12 = arith.constant 0 : index
    %16 = vector.load %arg6[%c0_11, %c0_12] : memref<8x16xf32, #tpu.memory_space<vmem>>, vector<8x16xf32>
    tpu.vector_store %arg6[%c0_11, %c0_12], %15 {strides = array<i32>} : memref<8x16xf32, #tpu.memory_space<vmem>>, vector<8x16xf32>,
    return
  }
  func.func @transform_0(%arg0: i32) -> (i32, i32) {
    %c0_i32 = arith.constant 0 : i32
    %c0_i32_0 = arith.constant 0 : i32
    return %arg0, %c0_i32 : i32, i32
  }
  func.func @transform_1(%arg0: i32) -> (i32, i32) {
    %c0_i32 = arith.constant 0 : i32
    %c0_i32_0 = arith.constant 0 : i32
    %c0_i32_1 = arith.constant 0 : i32
    return %c0_i32, %c0_i32_0 : i32, i32
  }
  func.func @transform_2(%arg0: i32) -> (i32, i32) {
    %c0_i32 = arith.constant 0 : i32
    %c0_i32_0 = arith.constant 0 : i32
    %c0_i32_1 = arith.constant 0 : i32
    return %c0_i32, %c0_i32_0 : i32, i32
  }
  func.func @transform_3(%arg0: i32) -> (i32, i32) {
    %c0_i32 = arith.constant 0 : i32
    %c0_i32_0 = arith.constant 0 : i32
    %c0_i32_1 = arith.constant 0 : i32
    return %c0_i32, %c0_i32_0 : i32, i32
  }
  func.func @transform_4(%arg0: i32) -> (i32, i32) {
    %c0_i32 = arith.constant 0 : i32
    %c0_i32_0 = arith.constant 0 : i32
    %c0_i32_1 = arith.constant 0 : i32
    return %c0_i32, %c0_i32_0 : i32, i32
  }
  func.func @transform_5(%arg0: i32) -> (i32, i32) {
    %c0_i32 = arith.constant 0 : i32
    %c0_i32_0 = arith.constant 0 : i32
    return %arg0, %c0_i32 : i32, i32
  }
}

module attributes {stable_mosaic.version = 11 : i64} {
  func.func @decoder_kernel(%arg0: i32, %arg1: memref<8x32xf32, #tpu.memory_space<vmem>>, %arg2: memref<32x128xbf16, #tpu.memory_space<vmem>>, %arg3: memref<1x128xf32, #tpu.memory_space<vmem>>, %arg4: memref<128x16xbf16, #tpu.memory_space<vmem>>, %arg5: memref<1x16xf32, #tpu.memory_space<vmem>>, %arg6: memref<8x16xf32, #tpu.memory_space<vmem>>) attributes {dimension_semantics = [#tpu.dimension_semantics<parallel>], iteration_bounds = array<i64: 1>, scalar_prefetch = 0 : i64, scratch_operands = 0 : i64, tpu.core_type = #tpu.core_type<tc>, window_params = [{transform_indices = @transform_0, window_bounds = array<i64: 8, 32>}, {pipeline_mode = #tpu.pipeline_mode<synchronous>, transform_indices = @transform_1, window_bounds = array<i64: 32, 128>}, {pipeline_mode = #tpu.pipeline_mode<synchronous>, transform_indices = @transform_2, window_bounds = array<i64: 1, 128>}, {pipeline_mode = #tpu.pipeline_mode<synchronous>, transform_indices = @transform_3, window_bounds = array<i64: 128, 16>}, {pipeline_mode = #tpu.pipeline_mode<synchronous>, transform_indices = @transform_4, window_bounds = array<i64: 1, 16>}, {transform_indices = @transform_5, window_bounds = array<i64: 8, 16>}]} {
    %c0 = arith.constant 0 : index
    %c0_0 = arith.constant 0 : index
    %0 = vector.load %arg1[%c0, %c0_0] : memref<8x32xf32, #tpu.memory_space<vmem>>, vector<8x32xf32>
    %1 = arith.truncf %0 : vector<8x32xf32> to vector<8x32xbf16>
    %c0_1 = arith.constant 0 : index
    %c0_2 = arith.constant 0 : index
    %2 = vector.load %arg2[%c0_1, %c0_2] : memref<32x128xbf16, #tpu.memory_space<vmem>>, vector<32x128xbf16>
    %cst = arith.constant dense<0.000000e+00> : vector<8x128xf32>
    %3 = tpu.matmul %1, %2, %cst {dimension_numbers = #tpu.dot_dimension_numbers<[1], [0], [0], [1], [0, 0, 1, 1], [], []>} : vector<8x32xbf16>, vector<32x128xbf16>, vector<8x128xf32> -> vector<8x128xf32>
    %c0_3 = arith.constant 0 : index
    %c0_4 = arith.constant 0 : index
    %4 = vector.load %arg3[%c0_3, %c0_4] : memref<1x128xf32, #tpu.memory_space<vmem>>, vector<1x128xf32>
    %5 = vector.broadcast %4 : vector<1x128xf32> to vector<8x128xf32>
    %6 = arith.addf %3, %5 : vector<8x128xf32>
    %cst_5 = arith.constant 0.000000e+00 : f32
    %7 = vector.broadcast %cst_5 : f32 to vector<8x128xf32>
    %8 = arith.maximumf %6, %7 : vector<8x128xf32>
    %9 = arith.truncf %8 : vector<8x128xf32> to vector<8x128xbf16>
    %c0_6 = arith.constant 0 : index
    %c0_7 = arith.constant 0 : index
    %10 = vector.load %arg4[%c0_6, %c0_7] : memref<128x16xbf16, #tpu.memory_space<vmem>>, vector<128x16xbf16>
    %cst_8 = arith.constant dense<0.000000e+00> : vector<8x16xf32>
    %11 = tpu.matmul %9, %10, %cst_8 {dimension_numbers = #tpu.dot_dimension_numbers<[1], [0], [0], [1], [0, 0, 1, 1], [], []>} : vector<8x128xbf16>, vector<128x16xbf16>, vector<8x16xf32> -> vector<8x16xf32>
    %c0_9 = arith.constant 0 : index
    %c0_10 = arith.constant 0 : index
    %12 = vector.load %arg5[%c0_9, %c0_10] : memref<1x16xf32, #tpu.memory_space<vmem>>, vector<1x16xf32>
    %13 = vector.broadcast %12 : vector<1x16xf32> to vector<8x16xf32>
    %14 = arith.addf %11, %13 : vector<8x16xf32>
    %15 = math.tanh %14 : vector<8x16xf32>
    %c0_11 = arith.constant 0 : index
    %c0_12 = arith.constant 0 : index
    %16 = vector.load %arg6[%c0_11, %c0_12] : memref<8x16xf32, #tpu.memory_space<vmem>>, vector<8x16xf32>
    tpu.vector_store %arg6[%c0_11, %c0_12], %15 {strides = array<i32>} : memref<8x16xf32, #tpu.memory_space<vmem>>, vector<8x16xf32>,
    return
  }
  func.func @transform_0(%arg0: i32) -> (i32, i32) {
    %c0_i32 = arith.constant 0 : i32
    %c0_i32_0 = arith.constant 0 : i32
    return %arg0, %c0_i32 : i32, i32
  }
  func.func @transform_1(%arg0: i32) -> (i32, i32) {
    %c0_i32 = arith.constant 0 : i32
    %c0_i32_0 = arith.constant 0 : i32
    %c0_i32_1 = arith.constant 0 : i32
    return %c0_i32, %c0_i32_0 : i32, i32
  }
  func.func @transform_2(%arg0: i32) -> (i32, i32) {
    %c0_i32 = arith.constant 0 : i32
    %c0_i32_0 = arith.constant 0 : i32
    %c0_i32_1 = arith.constant 0 : i32
    return %c0_i32, %c0_i32_0 : i32, i32
  }
  func.func @transform_3(%arg0: i32) -> (i32, i32) {
    %c0_i32 = arith.constant 0 : i32
    %c0_i32_0 = arith.constant 0 : i32
    %c0_i32_1 = arith.constant 0 : i32
    return %c0_i32, %c0_i32_0 : i32, i32
  }
  func.func @transform_4(%arg0: i32) -> (i32, i32) {
    %c0_i32 = arith.constant 0 : i32
    %c0_i32_0 = arith.constant 0 : i32
    %c0_i32_1 = arith.constant 0 : i32
    return %c0_i32, %c0_i32_0 : i32, i32
  }
  func.func @transform_5(%arg0: i32) -> (i32, i32) {
    %c0_i32 = arith.constant 0 : i32
    %c0_i32_0 = arith.constant 0 : i32
    return %arg0, %c0_i32 : i32, i32
  }
}

</mosaic_0001>

<llo_original>
// kernel: tpu_custom_call.1
$region0: #{tpu_custom_call.1}
  #allocation0 [shape = 'u32[]', space=smem, size = 0x4, offset = 0x4, fixed_abs, tag = 'smem constant byte address 0x4 - core index']
  #allocation1 [shape = 'u32[144,128]{1,0:T(1,128)}', space=vmem, size = 0x12000, scoped, tag = 'internal scratch']
  %s0 = inlined_call_operand.vmem [shape: f32[8,32], index: 0, kind: input, shape index: {}]
  %s1 = inlined_call_operand.vmem [shape: bf16[32,128], index: 1, kind: input, shape index: {}]
  %s2 = inlined_call_operand.vmem [shape: f32[1,128], index: 2, kind: input, shape index: {}]
  %s3 = inlined_call_operand.vmem [shape: bf16[128,16], index: 3, kind: input, shape index: {}]
  %s4 = inlined_call_operand.vmem [shape: f32[1,16], index: 4, kind: input, shape index: {}]
  %s5 = inlined_call_operand.hbm [shape: f32[8,16], index: 5, kind: output, shape index: {}]
  %s6 = sld [smem:[#allocation0]]
  $region30: #{tpu_custom_call.1} parent=0
    _
  %s8 = ssub.s32 1, %s6
  %s9 = scalar_select 0, %s8, %s6
  $region1: #{tpu_custom_call.1} parent=0
    #allocation2 [shape = 'u8[4096]{0}', space=vmem, size = 0x1000, scoped, tag = 'output window, operand 0, single buffered']
    #allocation3 [shape = 's32[1]{0}', space=sflag, size = 0x4, scoped, tag = 'scoped memory for tpu_custom_call.1']
    %10 = vsyncpa [#allocation3], 0
    // Predicated region
    $region2: #{tpu_custom_call.1} parent=1 // pred_check
      _
    $region3: #{tpu_custom_call.1} parent=1 // pred_check_branch
      %12 = sbr.rel (0) target = $region5
    $region4: #{tpu_custom_call.1} parent=1 // pred_region
      _
    $region5: #{tpu_custom_call.1} parent=1 // pred_fallthru
      _
    // Predicated region
    $region6: #{tpu_custom_call.1} parent=1 // pred_check
      _
    $region7: #{tpu_custom_call.1} parent=1 // pred_check_branch
      %14 = sbr.rel (0) target = $region9
    $region8: #{tpu_custom_call.1} parent=1 // pred_region
      _
    $region9: #{tpu_custom_call.1} parent=1 // pred_fallthru
      _
    // Predicated region
    $region10: #{tpu_custom_call.1} parent=1 // pred_check
      _
    $region11: #{tpu_custom_call.1} parent=1 // pred_check_branch
      %16 = sbr.rel (0) target = $region13
    $region12: #{tpu_custom_call.1} parent=1 // pred_region
      _
    $region13: #{tpu_custom_call.1} parent=1 // pred_fallthru
      _
    // Predicated region
    $region14: #{tpu_custom_call.1} parent=1 // pred_check
      _
    $region15: #{tpu_custom_call.1} parent=1 // pred_check_branch
      %18 = sbr.rel (0) target = $region17
    $region16: #{tpu_custom_call.1} parent=1 // pred_region
      _
    $region17: #{tpu_custom_call.1} parent=1 // pred_fallthru
      _
    // Predicated region
    $region18: #{tpu_custom_call.1} parent=1 // pred_check
      _
    $region19: #{tpu_custom_call.1} parent=1 // pred_check_branch
      %20 = sbr.rel (0) target = $region21
    $region20: #{tpu_custom_call.1} parent=1 // pred_region
      _
    $region21: #{tpu_custom_call.1} parent=1 // pred_fallthru
      _
    %v22 = vld [vmem:[%s0] sm:$0xff]
    %v23 = vpack.c.bf16 %v22, %v22
    %v24 = vld [vmem:[%s1] sm:$0xf]
    %v25 = vld [vmem:[%s1 + $0x4] sm:$0xf]
    %v26 = vld [vmem:[%s1 + $0x8] sm:$0xf]
    %v27 = vld [vmem:[%s1 + $0xc] sm:$0xf]
    %v28 = vld [vmem:[%s2] sm:$0x1]
    %v30 = vlaneseq
    %v31 = vshrl.u32 %v30, 7
    %v32 = vsub.s32 0, %v31
    %v33 = vrot.slane %v28, %v32
    %v39 = vunpack.c.l.b16 %v24
    %v40 = vunpack.c.l.b16 %v25
    %v41 = vunpack.c.l.b16 %v26
    %v42 = vunpack.c.l.b16 %v27
    %v43 = vpack.c.b16 %v40, %v39
    %v44 = vpack.c.b16 %v42, %v41
    %vm47 = vcmask 261120
    %v49 = vsel %vm47, %v23, 0
    %51 = vmatprep.subr.bf16.mxu0 0
    %52 = vmatpush1.bf16.msra.mxu0 %v43
    %53 = vmatprep.subr.bf16.mxu0 0
    %54 = vmatpush1.bf16.msra.mxu0 %v44
    %55 = vmatprep.subr.bf16.mxu0 0
    %56 = vmatpush1.bf16.msra.mxu0 0
    %57 = vmatprep.subr.bf16.mxu0 0
    %58 = vmatpush1.bf16.msra.mxu0 0
    %59 = vmatprep.subr.bf16.mxu0 0
    %60 = vmatpush1.bf16.msra.mxu0 0
    %61 = vmatprep.subr.bf16.mxu0 0
    %62 = vmatpush1.bf16.msra.mxu0 0
    %63 = vmatprep.subr.bf16.mxu0 0
    %64 = vmatpush1.bf16.msra.mxu0 0
    %65 = vmatprep.subr.bf16.mxu0 0
    %66 = vmatpush1.bf16.msra.mxu0 0
    %67 = vmatprep.subr.bf16.mxu0 0
    %68 = vmatpush1.bf16.msra.mxu0 0
    %69 = vmatprep.subr.bf16.mxu0 0
    %70 = vmatpush1.bf16.msra.mxu0 0
    %71 = vmatprep.subr.bf16.mxu0 0
    %72 = vmatpush1.bf16.msra.mxu0 0
    %73 = vmatprep.subr.bf16.mxu0 0
    %74 = vmatpush1.bf16.msra.mxu0 0
    %75 = vmatprep.subr.bf16.mxu0 0
    %76 = vmatpush1.bf16.msra.mxu0 0
    %77 = vmatprep.subr.bf16.mxu0 0
    %78 = vmatpush1.bf16.msra.mxu0 0
    %79 = vmatprep.subr.bf16.mxu0 0
    %80 = vmatpush1.bf16.msra.mxu0 0
    %81 = vmatprep.subr.bf16.mxu0 0
    %82 = vmatpush1.bf16.msra.mxu0 0
    %83 = vmatprep.mubr.bf16.mxu0 0
    %84 = vmatmul.mubr.bf16.gmra.mrb[0].mxu0 %v49
    %v85 = vpop.f32.mrb[0].mxu0
    %v86 = vadd.f32 %v33, %v85
    %v87 = vpop.f32.mrb[0].mxu0
    %v88 = vpop.f32.mrb[0].mxu0
    %v89 = vpop.f32.mrb[0].mxu0
    %90 = vdwg.mxu0
    %v91 = vmax.f32 %v86, 0.0
    %v92 = vpack.c.bf16 %v91, %v91
    %v93 = vld [vmem:[%s3] sm:$0xf]
    %v94 = vld [vmem:[%s3 + $0x4] sm:$0xf]
    %v95 = vld [vmem:[%s3 + $0x8] sm:$0xf]
    %v96 = vld [vmem:[%s3 + $0xc] sm:$0xf]
    %v97 = vld [vmem:[%s3 + $0x10] sm:$0xf]
    %v98 = vld [vmem:[%s3 + $0x14] sm:$0xf]
    %v99 = vld [vmem:[%s3 + $0x18] sm:$0xf]
    %v100 = vld [vmem:[%s3 + $0x1c] sm:$0xf]
    %v101 = vld [vmem:[%s3 + $0x20] sm:$0xf]
    %v102 = vld [vmem:[%s3 + $0x24] sm:$0xf]
    %v103 = vld [vmem:[%s3 + $0x28] sm:$0xf]
    %v104 = vld [vmem:[%s3 + $0x2c] sm:$0xf]
    %v105 = vld [vmem:[%s3 + $0x30] sm:$0xf]
    %v106 = vld [vmem:[%s3 + $0x34] sm:$0xf]
    %v107 = vld [vmem:[%s3 + $0x38] sm:$0xf]
    %v108 = vld [vmem:[%s3 + $0x3c] sm:$0xf]
    %v109 = vld [vmem:[%s4] sm:$0x1]
    %v111 = vlaneseq
    %v112 = vshrl.u32 %v111, 7
    %v113 = vsub.s32 0, %v112
    %v114 = vrot.slane %v109, %v113
    %v132 = vunpack.c.l.b16 %v93
    %v133 = vunpack.c.l.b16 %v94
    %v134 = vunpack.c.l.b16 %v95
    %v135 = vunpack.c.l.b16 %v96
    %v136 = vunpack.c.l.b16 %v97
    %v137 = vunpack.c.l.b16 %v98
    %v138 = vunpack.c.l.b16 %v99
    %v139 = vunpack.c.l.b16 %v100
    %v140 = vunpack.c.l.b16 %v101
    %v141 = vunpack.c.l.b16 %v102
    %v142 = vunpack.c.l.b16 %v103
    %v143 = vunpack.c.l.b16 %v104
    %v144 = vunpack.c.l.b16 %v105
    %v145 = vunpack.c.l.b16 %v106
    %v146 = vunpack.c.l.b16 %v107
    %v147 = vunpack.c.l.b16 %v108
    %v148 = vpack.c.b16 %v133, %v132
    %v149 = vpack.c.b16 %v135, %v134
    %v150 = vpack.c.b16 %v137, %v136
    %v151 = vpack.c.b16 %v139, %v138
    %v152 = vpack.c.b16 %v141, %v140
    %v153 = vpack.c.b16 %v143, %v142
    %v154 = vpack.c.b16 %v145, %v144
    %v155 = vpack.c.b16 %v147, %v146
    %164 = vmatprep.subr.bf16.mxu0 0
    %165 = vmatpush1.bf16.msra.mxu0 %v148
    %166 = vmatprep.subr.bf16.mxu0 0
    %167 = vmatpush1.bf16.msra.mxu0 %v149
    %168 = vmatprep.subr.bf16.mxu0 0
    %169 = vmatpush1.bf16.msra.mxu0 %v150
    %170 = vmatprep.subr.bf16.mxu0 0
    %171 = vmatpush1.bf16.msra.mxu0 %v151
    %172 = vmatprep.subr.bf16.mxu0 0
    %173 = vmatpush1.bf16.msra.mxu0 %v152
    %174 = vmatprep.subr.bf16.mxu0 0
    %175 = vmatpush1.bf16.msra.mxu0 %v153
    %176 = vmatprep.subr.bf16.mxu0 0
    %177 = vmatpush1.bf16.msra.mxu0 %v154
    %178 = vmatprep.subr.bf16.mxu0 0
    %179 = vmatpush1.bf16.msra.mxu0 %v155
    %180 = vmatprep.subr.bf16.mxu0 0
    %181 = vmatpush1.bf16.msra.mxu0 0
    %182 = vmatprep.subr.bf16.mxu0 0
    %183 = vmatpush1.bf16.msra.mxu0 0
    %184 = vmatprep.subr.bf16.mxu0 0
    %185 = vmatpush1.bf16.msra.mxu0 0
    %186 = vmatprep.subr.bf16.mxu0 0
    %187 = vmatpush1.bf16.msra.mxu0 0
    %188 = vmatprep.subr.bf16.mxu0 0
    %189 = vmatpush1.bf16.msra.mxu0 0
    %190 = vmatprep.subr.bf16.mxu0 0
    %191 = vmatpush1.bf16.msra.mxu0 0
    %192 = vmatprep.subr.bf16.mxu0 0
    %193 = vmatpush1.bf16.msra.mxu0 0
    %194 = vmatprep.subr.bf16.mxu0 0
    %195 = vmatpush1.bf16.msra.mxu0 0
    %196 = vmatprep.mubr.bf16.mxu0 0
    %197 = vmatmul.mubr.bf16.gmra.mrb[0].mxu0 %v92
    %v198 = vpop.f32.mrb[0].mxu0
    %v199 = vadd.f32 %v114, %v198
    %v200 = vpop.f32.mrb[0].mxu0
    %v201 = vpop.f32.mrb[0].mxu0
    %v202 = vpop.f32.mrb[0].mxu0
    %203 = vdwg.mxu0
    %v204 = vtanh.pop %v199
    %vm205 = vcmask 130048
    %206 = vst.msk [vmem:[#allocation2] sm:$0xff] %vm205, %v204
    // Predicated region
    $region22: #{tpu_custom_call.1} parent=1 // pred_check
      _
    $region23: #{tpu_custom_call.1} parent=1 // pred_check_branch
      %208 = sbr.rel (0) target = $region25
    $region24: #{tpu_custom_call.1} parent=1 // pred_region
      %s210 = ssub.s32 128, 128
      %211 = vsyncadd [#allocation3], %s210
      %s213 = sshll.u32 [#allocation2], 4
      %s214 = int_to_ptr.vmem [resolvable:$true] %s213
      %216 = dma.vmem_to_hbm [thread:$0]  %s214, 128, %s5, [#allocation3]
    $region25: #{tpu_custom_call.1} parent=1 // pred_fallthru
      _
    // Predicated region
    $region26: #{tpu_custom_call.1} parent=1 // pred_check
      _
    $region27: #{tpu_custom_call.1} parent=1 // pred_check_branch
      %218 = sbr.rel (0) target = $region29
    $region28: #{tpu_custom_call.1} parent=1 // pred_region
      %219 = dma.done [#allocation3], 128
    $region29: #{tpu_custom_call.1} parent=1 // pred_fallthru
      _
    %220 = vsyncpa [#allocation3], 1

// kernel: tpu_custom_call.1
$region0: #{tpu_custom_call.1}
  #allocation0 [shape = 'u32[]', space=smem, size = 0x4, offset = 0x4, fixed_abs, tag = 'smem constant byte address 0x4 - core index']
  #allocation1 [shape = 'u32[144,128]{1,0:T(1,128)}', space=vmem, size = 0x12000, scoped, tag = 'internal scratch']
  %s0 = inlined_call_operand.vmem [shape: f32[8,32], index: 0, kind: input, shape index: {}]
  %s1 = inlined_call_operand.vmem [shape: bf16[32,128], index: 1, kind: input, shape index: {}]
  %s2 = inlined_call_operand.vmem [shape: f32[1,128], index: 2, kind: input, shape index: {}]
  %s3 = inlined_call_operand.vmem [shape: bf16[128,16], index: 3, kind: input, shape index: {}]
  %s4 = inlined_call_operand.vmem [shape: f32[1,16], index: 4, kind: input, shape index: {}]
  %s5 = inlined_call_operand.hbm [shape: f32[8,16], index: 5, kind: output, shape index: {}]
  %s6 = sld [smem:[#allocation0]]
  $region30: #{tpu_custom_call.1} parent=0
    _
  %s8 = ssub.s32 1, %s6
  %s9 = scalar_select 0, %s8, %s6
  $region1: #{tpu_custom_call.1} parent=0
    #allocation2 [shape = 'u8[4096]{0}', space=vmem, size = 0x1000, scoped, tag = 'output window, operand 0, single buffered']
    #allocation3 [shape = 's32[1]{0}', space=sflag, size = 0x4, scoped, tag = 'scoped memory for tpu_custom_call.1']
    %10 = vsyncpa [#allocation3], 0
    // Predicated region
    $region2: #{tpu_custom_call.1} parent=1 // pred_check
      _
    $region3: #{tpu_custom_call.1} parent=1 // pred_check_branch
      %12 = sbr.rel (0) target = $region5
    $region4: #{tpu_custom_call.1} parent=1 // pred_region
      _
    $region5: #{tpu_custom_call.1} parent=1 // pred_fallthru
      _
    // Predicated region
    $region6: #{tpu_custom_call.1} parent=1 // pred_check
      _
    $region7: #{tpu_custom_call.1} parent=1 // pred_check_branch
      %14 = sbr.rel (0) target = $region9
    $region8: #{tpu_custom_call.1} parent=1 // pred_region
      _
    $region9: #{tpu_custom_call.1} parent=1 // pred_fallthru
      _
    // Predicated region
    $region10: #{tpu_custom_call.1} parent=1 // pred_check
      _
    $region11: #{tpu_custom_call.1} parent=1 // pred_check_branch
      %16 = sbr.rel (0) target = $region13
    $region12: #{tpu_custom_call.1} parent=1 // pred_region
      _
    $region13: #{tpu_custom_call.1} parent=1 // pred_fallthru
      _
    // Predicated region
    $region14: #{tpu_custom_call.1} parent=1 // pred_check
      _
    $region15: #{tpu_custom_call.1} parent=1 // pred_check_branch
      %18 = sbr.rel (0) target = $region17
    $region16: #{tpu_custom_call.1} parent=1 // pred_region
      _
    $region17: #{tpu_custom_call.1} parent=1 // pred_fallthru
      _
    // Predicated region
    $region18: #{tpu_custom_call.1} parent=1 // pred_check
      _
    $region19: #{tpu_custom_call.1} parent=1 // pred_check_branch
      %20 = sbr.rel (0) target = $region21
    $region20: #{tpu_custom_call.1} parent=1 // pred_region
      _
    $region21: #{tpu_custom_call.1} parent=1 // pred_fallthru
      _
    %v22 = vld [vmem:[%s0] sm:$0xff]
    %v23 = vpack.c.bf16 %v22, %v22
    %v24 = vld [vmem:[%s1] sm:$0xf]
    %v25 = vld [vmem:[%s1 + $0x4] sm:$0xf]
    %v26 = vld [vmem:[%s1 + $0x8] sm:$0xf]
    %v27 = vld [vmem:[%s1 + $0xc] sm:$0xf]
    %v28 = vld [vmem:[%s2] sm:$0x1]
    %v30 = vlaneseq
    %v31 = vshrl.u32 %v30, 7
    %v32 = vsub.s32 0, %v31
    %v33 = vrot.slane %v28, %v32
    %v39 = vunpack.c.l.b16 %v24
    %v40 = vunpack.c.l.b16 %v25
    %v41 = vunpack.c.l.b16 %v26
    %v42 = vunpack.c.l.b16 %v27
    %v43 = vpack.c.b16 %v40, %v39
    %v44 = vpack.c.b16 %v42, %v41
    %vm47 = vcmask 261120
    %v49 = vsel %vm47, %v23, 0
    %51 = vmatprep.subr.bf16.mxu0 0
    %52 = vmatpush1.bf16.msra.mxu0 %v43
    %53 = vmatprep.subr.bf16.mxu0 0
    %54 = vmatpush1.bf16.msra.mxu0 %v44
    %55 = vmatprep.subr.bf16.mxu0 0
    %56 = vmatpush1.bf16.msra.mxu0 0
    %57 = vmatprep.subr.bf16.mxu0 0
    %58 = vmatpush1.bf16.msra.mxu0 0
    %59 = vmatprep.subr.bf16.mxu0 0
    %60 = vmatpush1.bf16.msra.mxu0 0
    %61 = vmatprep.subr.bf16.mxu0 0
    %62 = vmatpush1.bf16.msra.mxu0 0
    %63 = vmatprep.subr.bf16.mxu0 0
    %64 = vmatpush1.bf16.msra.mxu0 0
    %65 = vmatprep.subr.bf16.mxu0 0
    %66 = vmatpush1.bf16.msra.mxu0 0
    %67 = vmatprep.subr.bf16.mxu0 0
    %68 = vmatpush1.bf16.msra.mxu0 0
    %69 = vmatprep.subr.bf16.mxu0 0
    %70 = vmatpush1.bf16.msra.mxu0 0
    %71 = vmatprep.subr.bf16.mxu0 0
    %72 = vmatpush1.bf16.msra.mxu0 0
    %73 = vmatprep.subr.bf16.mxu0 0
    %74 = vmatpush1.bf16.msra.mxu0 0
    %75 = vmatprep.subr.bf16.mxu0 0
    %76 = vmatpush1.bf16.msra.mxu0 0
    %77 = vmatprep.subr.bf16.mxu0 0
    %78 = vmatpush1.bf16.msra.mxu0 0
    %79 = vmatprep.subr.bf16.mxu0 0
    %80 = vmatpush1.bf16.msra.mxu0 0
    %81 = vmatprep.subr.bf16.mxu0 0
    %82 = vmatpush1.bf16.msra.mxu0 0
    %83 = vmatprep.mubr.bf16.mxu0 0
    %84 = vmatmul.mubr.bf16.gmra.mrb[0].mxu0 %v49
    %v85 = vpop.f32.mrb[0].mxu0
    %v86 = vadd.f32 %v33, %v85
    %v87 = vpop.f32.mrb[0].mxu0
    %v88 = vpop.f32.mrb[0].mxu0
    %v89 = vpop.f32.mrb[0].mxu0
    %90 = vdwg.mxu0
    %v91 = vmax.f32 %v86, 0.0
    %v92 = vpack.c.bf16 %v91, %v91
    %v93 = vld [vmem:[%s3] sm:$0xf]
    %v94 = vld [vmem:[%s3 + $0x4] sm:$0xf]
    %v95 = vld [vmem:[%s3 + $0x8] sm:$0xf]
    %v96 = vld [vmem:[%s3 + $0xc] sm:$0xf]
    %v97 = vld [vmem:[%s3 + $0x10] sm:$0xf]
    %v98 = vld [vmem:[%s3 + $0x14] sm:$0xf]
    %v99 = vld [vmem:[%s3 + $0x18] sm:$0xf]
    %v100 = vld [vmem:[%s3 + $0x1c] sm:$0xf]
    %v101 = vld [vmem:[%s3 + $0x20] sm:$0xf]
    %v102 = vld [vmem:[%s3 + $0x24] sm:$0xf]
    %v103 = vld [vmem:[%s3 + $0x28] sm:$0xf]
    %v104 = vld [vmem:[%s3 + $0x2c] sm:$0xf]
    %v105 = vld [vmem:[%s3 + $0x30] sm:$0xf]
    %v106 = vld [vmem:[%s3 + $0x34] sm:$0xf]
    %v107 = vld [vmem:[%s3 + $0x38] sm:$0xf]
    %v108 = vld [vmem:[%s3 + $0x3c] sm:$0xf]
    %v109 = vld [vmem:[%s4] sm:$0x1]
    %v111 = vlaneseq
    %v112 = vshrl.u32 %v111, 7
    %v113 = vsub.s32 0, %v112
    %v114 = vrot.slane %v109, %v113
    %v132 = vunpack.c.l.b16 %v93
    %v133 = vunpack.c.l.b16 %v94
    %v134 = vunpack.c.l.b16 %v95
    %v135 = vunpack.c.l.b16 %v96
    %v136 = vunpack.c.l.b16 %v97
    %v137 = vunpack.c.l.b16 %v98
    %v138 = vunpack.c.l.b16 %v99
    %v139 = vunpack.c.l.b16 %v100
    %v140 = vunpack.c.l.b16 %v101
    %v141 = vunpack.c.l.b16 %v102
    %v142 = vunpack.c.l.b16 %v103
    %v143 = vunpack.c.l.b16 %v104
    %v144 = vunpack.c.l.b16 %v105
    %v145 = vunpack.c.l.b16 %v106
    %v146 = vunpack.c.l.b16 %v107
    %v147 = vunpack.c.l.b16 %v108
    %v148 = vpack.c.b16 %v133, %v132
    %v149 = vpack.c.b16 %v135, %v134
    %v150 = vpack.c.b16 %v137, %v136
    %v151 = vpack.c.b16 %v139, %v138
    %v152 = vpack.c.b16 %v141, %v140
    %v153 = vpack.c.b16 %v143, %v142
    %v154 = vpack.c.b16 %v145, %v144
    %v155 = vpack.c.b16 %v147, %v146
    %164 = vmatprep.subr.bf16.mxu0 0
    %165 = vmatpush1.bf16.msra.mxu0 %v148
    %166 = vmatprep.subr.bf16.mxu0 0
    %167 = vmatpush1.bf16.msra.mxu0 %v149
    %168 = vmatprep.subr.bf16.mxu0 0
    %169 = vmatpush1.bf16.msra.mxu0 %v150
    %170 = vmatprep.subr.bf16.mxu0 0
    %171 = vmatpush1.bf16.msra.mxu0 %v151
    %172 = vmatprep.subr.bf16.mxu0 0
    %173 = vmatpush1.bf16.msra.mxu0 %v152
    %174 = vmatprep.subr.bf16.mxu0 0
    %175 = vmatpush1.bf16.msra.mxu0 %v153
    %176 = vmatprep.subr.bf16.mxu0 0
    %177 = vmatpush1.bf16.msra.mxu0 %v154
    %178 = vmatprep.subr.bf16.mxu0 0
    %179 = vmatpush1.bf16.msra.mxu0 %v155
    %180 = vmatprep.subr.bf16.mxu0 0
    %181 = vmatpush1.bf16.msra.mxu0 0
    %182 = vmatprep.subr.bf16.mxu0 0
    %183 = vmatpush1.bf16.msra.mxu0 0
    %184 = vmatprep.subr.bf16.mxu0 0
    %185 = vmatpush1.bf16.msra.mxu0 0
    %186 = vmatprep.subr.bf16.mxu0 0
    %187 = vmatpush1.bf16.msra.mxu0 0
    %188 = vmatprep.subr.bf16.mxu0 0
    %189 = vmatpush1.bf16.msra.mxu0 0
    %190 = vmatprep.subr.bf16.mxu0 0
    %191 = vmatpush1.bf16.msra.mxu0 0
    %192 = vmatprep.subr.bf16.mxu0 0
    %193 = vmatpush1.bf16.msra.mxu0 0
    %194 = vmatprep.subr.bf16.mxu0 0
    %195 = vmatpush1.bf16.msra.mxu0 0
    %196 = vmatprep.mubr.bf16.mxu0 0
    %197 = vmatmul.mubr.bf16.gmra.mrb[0].mxu0 %v92
    %v198 = vpop.f32.mrb[0].mxu0
    %v199 = vadd.f32 %v114, %v198
    %v200 = vpop.f32.mrb[0].mxu0
    %v201 = vpop.f32.mrb[0].mxu0
    %v202 = vpop.f32.mrb[0].mxu0
    %203 = vdwg.mxu0
    %v204 = vtanh.pop %v199
    %vm205 = vcmask 130048
    %206 = vst.msk [vmem:[#allocation2] sm:$0xff] %vm205, %v204
    // Predicated region
    $region22: #{tpu_custom_call.1} parent=1 // pred_check
      _
    $region23: #{tpu_custom_call.1} parent=1 // pred_check_branch
      %208 = sbr.rel (0) target = $region25
    $region24: #{tpu_custom_call.1} parent=1 // pred_region
      %s210 = ssub.s32 128, 128
      %211 = vsyncadd [#allocation3], %s210
      %s213 = sshll.u32 [#allocation2], 4
      %s214 = int_to_ptr.vmem [resolvable:$true] %s213
      %216 = dma.vmem_to_hbm [thread:$0]  %s214, 128, %s5, [#allocation3]
    $region25: #{tpu_custom_call.1} parent=1 // pred_fallthru
      _
    // Predicated region
    $region26: #{tpu_custom_call.1} parent=1 // pred_check
      _
    $region27: #{tpu_custom_call.1} parent=1 // pred_check_branch
      %218 = sbr.rel (0) target = $region29
    $region28: #{tpu_custom_call.1} parent=1 // pred_region
      %219 = dma.done [#allocation3], 128
    $region29: #{tpu_custom_call.1} parent=1 // pred_fallthru
      _
    %220 = vsyncpa [#allocation3], 1

</llo_original>
